<compile_context>
chip_gen: v7x
topology: tpu7x:2x2x1
jax: 0.10.0
libtpu: 0.0.40
codegen_flags: <defaults>
</compile_context>

<pallas_src>
import functools

import jax
import jax.numpy as jnp
from jax.experimental import pallas as pl
from jax.experimental.pallas import tpu as pltpu

LEAKY_SLOPE = 0.01   # PyTorch F.leaky_relu default
BN_EPS = 1e-5        # nn.BatchNorm1d default
FEAT = 128           # lane width used for padded hidden activations / weight columns
ROW_ALIGN = 16       # bf16 sublane packing: keep every weight block 16-row aligned
OUT_DIM = 2


# --------------------------------------------------------------------------- kernel

def blackbox_kernel(x_ref, w_ref, b_ref, out_ref, *, layer_rows):
    """Fused 5-layer MLP.  layer_rows: static ((row_off, k_pad), ...) per layer."""
    h = x_ref[...]                                               # (tile_b, in_dim_pad) f32
    n_layers = len(layer_rows)
    for i, (row_off, k) in enumerate(layer_rows):
        # Padded lanes of h and padded rows of the weight block are exact zeros, so
        # slicing to k_pad keeps the math exact while shrinking the MXU K depth.
        lhs = h[:, :k].astype(jnp.bfloat16)                      # bf16 MXU operand
        w = w_ref[pl.ds(row_off, k), :]                          # (k, 128) bf16 block
        h = jnp.dot(lhs, w, preferred_element_type=jnp.float32)  # f32 accumulation
        h = h + b_ref[pl.ds(i, 1), :]                            # (1, 128) f32 bias row
        if i + 1 < n_layers:
            h = jnp.maximum(h, LEAKY_SLOPE * h)                  # leaky_relu (single VPU op)
    out_ref[...] = h[:, : out_ref.shape[-1]].astype(out_ref.dtype)


# ------------------------------------------------------------------- parameter prep

def make_blackbox_params(key, in_dim, hidden=32):
    """PyTorch-default Linear init; non-trivial eval-mode BN running stats.

    Linear weights are stored transposed vs. PyTorch, i.e. (in_features, out_features).
    """
    dims = [in_dim, hidden, hidden // 2, hidden // 4, hidden // 8, 2]
    params = []
    for i in range(5):
        fan_in, fan_out = dims[i], dims[i + 1]
        key, kw, kb, kg, kbe, km, kv = jax.random.split(key, 7)
        bound = 1.0 / (fan_in ** 0.5)
        w = jax.random.uniform(kw, (fan_in, fan_out), jnp.float32, -bound, bound)
        b = jax.random.uniform(kb, (1, fan_out), jnp.float32, -bound, bound)
        layer = {"w": w, "b": b}
        if i < 4:  # BN follows the first 4 linears only
            layer["gamma"] = jax.random.uniform(kg, (1, fan_out), jnp.float32, 0.5, 1.5)
            layer["beta"] = 0.1 * jax.random.normal(kbe, (1, fan_out), jnp.float32)
            layer["mean"] = 0.1 * jax.random.normal(km, (1, fan_out), jnp.float32)
            layer["var"] = jax.random.uniform(kv, (1, fan_out), jnp.float32, 0.5, 1.5)
        params.append(layer)
    return params


def fold_bn_into_linears(params):
    """Fold eval-mode BN_i into Linear_{i+1}; returns 5 (w, b) pairs ((in,out),(1,out)).

    a @ W + b with a = h*s + t  ==  h @ (s[:,None]*W) + (t @ W + b),
    s = gamma * rsqrt(var+eps), t = beta - mean*s.
    """
    folded = []
    s_prev, t_prev = None, None
    for p in params:
        w, b = p["w"], p["b"]
        if s_prev is not None:
            b = b + t_prev @ w               # uses the un-scaled weight
            w = s_prev[:, None] * w
        folded.append((w, b))
        if "gamma" in p:
            s = p["gamma"][0] * jax.lax.rsqrt(p["var"][0] + BN_EPS)   # (out,)
            t = p["beta"][0] - p["mean"][0] * s                       # (out,)
            s_prev, t_prev = s, t[None, :]
        else:
            s_prev, t_prev = None, None
    return folded


def _round_up(n, m):
    return ((n + m - 1) // m) * m


def pack_params(folded, feat=FEAT, align=ROW_ALIGN):
    """Pack folded weights into one compact bf16 slab (sum of 16-aligned K depths, feat)
    and biases into one (8, feat) f32 slab.  Returns (w_slab, b_slab, layer_rows) where
    layer_rows is a static tuple of (row_offset, k_pad) per layer."""
    blocks, layer_rows, off = [], [], 0
    for w, _ in folded:
        k_true, n_true = w.shape
        assert n_true <= feat, "hidden width > 128 needs a wider FEAT packing"
        k_pad = _round_up(k_true, align)
        blk = jnp.zeros((k_pad, feat), jnp.float32).at[:k_true, :n_true].set(w)
        blocks.append(blk)
        layer_rows.append((off, k_pad))
        off += k_pad
    w_slab = jnp.concatenate(blocks, axis=0).astype(jnp.bfloat16)   # bf16 MXU operands

    b_slab = jnp.zeros((8, feat), jnp.float32)                      # biases stay f32
    for i, (_, b) in enumerate(folded):
        b_slab = b_slab.at[i, : b.shape[1]].set(b[0])
    return w_slab, b_slab, tuple(layer_rows)


# --------------------------------------------------------------------------- wrapper

def _cdiv(a, b):
    return -(-a // b)


def _choose_tiles(batch, max_tile=2048, sub=8):
    """(n_tiles, tile_b): tile_b is a multiple of 8, padded rows are minimized, and
    n_tiles is even (>=2) for non-tiny batches so both v7x TensorCores get work."""
    if batch <= sub:
        return 1, sub
    n_tiles = 2
    while _round_up(_cdiv(batch, n_tiles), sub) > max_tile:
        n_tiles += 2
    return n_tiles, _round_up(_cdiv(batch, n_tiles), sub)


@functools.partial(jax.jit, static_argnames=("layer_rows",))
def blackbox_forward(x, w_slab, b_slab, layer_rows):
    batch, in_dim = x.shape
    in_dim_pad = layer_rows[0][1]
    if in_dim_pad != in_dim:                       # zero-pad features to the slab's K depth
        x = jnp.pad(x, ((0, 0), (0, in_dim_pad - in_dim)))

    n_tiles, tile_b = _choose_tiles(batch)
    pad_batch = n_tiles * tile_b
    x_p = jnp.pad(x, ((0, pad_batch - batch), (0, 0))) if pad_batch != batch else x

    kernel = functools.partial(blackbox_kernel, layer_rows=layer_rows)
    out = pl.pallas_call(
        kernel,
        out_shape=jax.ShapeDtypeStruct((pad_batch, OUT_DIM), jnp.float32),
        grid=(n_tiles,),
        in_specs=[
            pl.BlockSpec((tile_b, in_dim_pad), lambda i: (i, 0)),   # batch-tiled activations
            pl.BlockSpec(w_slab.shape, lambda i: (0, 0)),           # resident bf16 weight slab
            pl.BlockSpec(b_slab.shape, lambda i: (0, 0)),           # resident f32 bias slab
        ],
        out_specs=pl.BlockSpec((tile_b, OUT_DIM), lambda i: (i, 0)),
        compiler_params=pltpu.CompilerParams(dimension_semantics=("parallel",)),
    )(x_p, w_slab, b_slab)
    return out[:batch] if pad_batch != batch else out


# ------------------------------------------------------------------------ references

def blackbox_reference(x, params):
    """Pure-JAX f32 reference implementing the original (unfolded) eval-mode forward."""
    h = x.astype(jnp.float32)
    for i, p in enumerate(params):
        h = h @ p["w"] + p["b"]
        if i < 4:
            h = jnp.where(h > 0, h, LEAKY_SLOPE * h)                       # leaky_relu
            h = (h - p["mean"]) * jax.lax.rsqrt(p["var"] + BN_EPS) * p["gamma"] + p["beta"]
            # dropout -> identity in eval mode
    return h


def blackbox_reference_bf16(x, folded):
    """Matched-precision reference: same folding + bf16 matmul inputs / f32 accumulate
    as the kernel, used for a tight numerical check."""
    h = x.astype(jnp.float32)
    for i, (w, b) in enumerate(folded):
        h = jnp.dot(h.astype(jnp.bfloat16), w.astype(jnp.bfloat16),
                    preferred_element_type=jnp.float32) + b
        if i + 1 < len(folded):
            h = jnp.maximum(h, LEAKY_SLOPE * h)
    return h


# ------------------------------------------------------------------------------ main

if __name__ == "__main__":
    key = jax.random.PRNGKey(0)
    k_params, k_x1, k_x2, k_x3 = jax.random.split(key, 4)

    in_dim, hidden = 16, 32   # small shapes: 16 -> 32 -> 16 -> 8 -> 4 -> 2
    params = make_blackbox_params(k_params, in_dim, hidden)
    folded = fold_bn_into_linears(params)
    w_slab, b_slab, layer_rows = pack_params(folded)

    # batch=8 (single tile), batch=1000 (2x504 tiles), batch=513 (2x260 tiles, minimal pad)
    for k_x, batch in ((k_x1, 8), (k_x2, 1000), (k_x3, 513)):
        x = jax.random.normal(k_x, (batch, in_dim), jnp.float32)
        out = jax.block_until_ready(blackbox_forward(x, w_slab, b_slab, layer_rows))
        assert out.shape == (batch, 2), out.shape

        # Tight check vs. matched bf16-input reference (catches indexing/layout bugs).
        ref_bf16 = blackbox_reference_bf16(x, folded)
        err_bf16 = float(jnp.max(jnp.abs(out - ref_bf16)))
        assert jnp.allclose(out, ref_bf16, atol=1e-4, rtol=1e-4), err_bf16

        # Loose semantic check vs. the original full-f32 eval-mode forward.
        ref_f32 = blackbox_reference(x, params)
        err_f32 = float(jnp.max(jnp.abs(out - ref_f32)))
        assert jnp.allclose(out, ref_f32, atol=5e-2, rtol=5e-2), err_f32

    print("KERNEL_OK")
</pallas_src>

<mosaic_0001>
module attributes {stable_mosaic.version = 11 : i64} {
  func.func @blackbox_kernel(%arg0: i32, %arg1: memref<8x16xf32, #tpu.memory_space<vmem>>, %arg2: memref<96x128xbf16, #tpu.memory_space<vmem>>, %arg3: memref<8x128xf32, #tpu.memory_space<vmem>>, %arg4: memref<8x2xf32, #tpu.memory_space<vmem>>) attributes {dimension_semantics = [#tpu.dimension_semantics<parallel>], iteration_bounds = array<i64: 1>, scalar_prefetch = 0 : i64, scratch_operands = 0 : i64, tpu.core_type = #tpu.core_type<tc>, window_params = [{transform_indices = @transform_0, window_bounds = array<i64: 8, 16>}, {pipeline_mode = #tpu.pipeline_mode<synchronous>, transform_indices = @transform_1, window_bounds = array<i64: 96, 128>}, {pipeline_mode = #tpu.pipeline_mode<synchronous>, transform_indices = @transform_2, window_bounds = array<i64: 8, 128>}, {transform_indices = @transform_3, window_bounds = array<i64: 8, 2>}]} {
    %c0 = arith.constant 0 : index
    %c0_0 = arith.constant 0 : index
    %0 = vector.load %arg1[%c0, %c0_0] : memref<8x16xf32, #tpu.memory_space<vmem>>, vector<8x16xf32>
    %1 = arith.truncf %0 : vector<8x16xf32> to vector<8x16xbf16>
    %c0_1 = arith.constant 0 : index
    %c0_2 = arith.constant 0 : index
    %2 = vector.load %arg2[%c0_1, %c0_2] : memref<96x128xbf16, #tpu.memory_space<vmem>>, vector<16x128xbf16>
    %cst = arith.constant dense<0.000000e+00> : vector<8x128xf32>
    %3 = tpu.matmul %1, %2, %cst {dimension_numbers = #tpu.dot_dimension_numbers<[1], [0], [0], [1], [0, 0, 1, 1], [], []>} : vector<8x16xbf16>, vector<16x128xbf16>, vector<8x128xf32> -> vector<8x128xf32>
    %c0_3 = arith.constant 0 : index
    %c0_4 = arith.constant 0 : index
    %4 = vector.load %arg3[%c0_3, %c0_4] : memref<8x128xf32, #tpu.memory_space<vmem>>, vector<1x128xf32>
    %5 = vector.broadcast %4 : vector<1x128xf32> to vector<8x128xf32>
    %6 = arith.addf %3, %5 : vector<8x128xf32>
    %cst_5 = arith.constant 0.00999999977 : f32
    %7 = vector.broadcast %cst_5 : f32 to vector<8x128xf32>
    %8 = arith.mulf %7, %6 : vector<8x128xf32>
    %9 = arith.maximumf %6, %8 : vector<8x128xf32>
    %10 = vector.extract_strided_slice %9 {offsets = [0, 0], sizes = [8, 32], strides = [1, 1]} : vector<8x128xf32> to vector<8x32xf32>
    %11 = arith.truncf %10 : vector<8x32xf32> to vector<8x32xbf16>
    %c16 = arith.constant 16 : index
    %c0_6 = arith.constant 0 : index
    %12 = vector.load %arg2[%c16, %c0_6] : memref<96x128xbf16, #tpu.memory_space<vmem>>, vector<32x128xbf16>
    %cst_7 = arith.constant dense<0.000000e+00> : vector<8x128xf32>
    %13 = tpu.matmul %11, %12, %cst_7 {dimension_numbers = #tpu.dot_dimension_numbers<[1], [0], [0], [1], [0, 0, 1, 1], [], []>} : vector<8x32xbf16>, vector<32x128xbf16>, vector<8x128xf32> -> vector<8x128xf32>
    %c1 = arith.constant 1 : index
    %c0_8 = arith.constant 0 : index
    %14 = vector.load %arg3[%c1, %c0_8] : memref<8x128xf32, #tpu.memory_space<vmem>>, vector<1x128xf32>
    %15 = vector.broadcast %14 : vector<1x128xf32> to vector<8x128xf32>
    %16 = arith.addf %13, %15 : vector<8x128xf32>
    %cst_9 = arith.constant 0.00999999977 : f32
    %17 = vector.broadcast %cst_9 : f32 to vector<8x128xf32>
    %18 = arith.mulf %17, %16 : vector<8x128xf32>
    %19 = arith.maximumf %16, %18 : vector<8x128xf32>
    %20 = vector.extract_strided_slice %19 {offsets = [0, 0], sizes = [8, 16], strides = [1, 1]} : vector<8x128xf32> to vector<8x16xf32>
    %21 = arith.truncf %20 : vector<8x16xf32> to vector<8x16xbf16>
    %c48 = arith.constant 48 : index
    %c0_10 = arith.constant 0 : index
    %22 = vector.load %arg2[%c48, %c0_10] : memref<96x128xbf16, #tpu.memory_space<vmem>>, vector<16x128xbf16>
    %cst_11 = arith.constant dense<0.000000e+00> : vector<8x128xf32>
    %23 = tpu.matmul %21, %22, %cst_11 {dimension_numbers = #tpu.dot_dimension_numbers<[1], [0], [0], [1], [0, 0, 1, 1], [], []>} : vector<8x16xbf16>, vector<16x128xbf16>, vector<8x128xf32> -> vector<8x128xf32>
    %c2 = arith.constant 2 : index
    %c0_12 = arith.constant 0 : index
    %24 = vector.load %arg3[%c2, %c0_12] : memref<8x128xf32, #tpu.memory_space<vmem>>, vector<1x128xf32>
    %25 = vector.broadcast %24 : vector<1x128xf32> to vector<8x128xf32>
    %26 = arith.addf %23, %25 : vector<8x128xf32>
    %cst_13 = arith.constant 0.00999999977 : f32
    %27 = vector.broadcast %cst_13 : f32 to vector<8x128xf32>
    %28 = arith.mulf %27, %26 : vector<8x128xf32>
    %29 = arith.maximumf %26, %28 : vector<8x128xf32>
    %30 = vector.extract_strided_slice %29 {offsets = [0, 0], sizes = [8, 16], strides = [1, 1]} : vector<8x128xf32> to vector<8x16xf32>
    %31 = arith.truncf %30 : vector<8x16xf32> to vector<8x16xbf16>
    %c64 = arith.constant 64 : index
    %c0_14 = arith.constant 0 : index
    %32 = vector.load %arg2[%c64, %c0_14] : memref<96x128xbf16, #tpu.memory_space<vmem>>, vector<16x128xbf16>
    %cst_15 = arith.constant dense<0.000000e+00> : vector<8x128xf32>
    %33 = tpu.matmul %31, %32, %cst_15 {dimension_numbers = #tpu.dot_dimension_numbers<[1], [0], [0], [1], [0, 0, 1, 1], [], []>} : vector<8x16xbf16>, vector<16x128xbf16>, vector<8x128xf32> -> vector<8x128xf32>
    %c3 = arith.constant 3 : index
    %c0_16 = arith.constant 0 : index
    %34 = vector.load %arg3[%c3, %c0_16] : memref<8x128xf32, #tpu.memory_space<vmem>>, vector<1x128xf32>
    %35 = vector.broadcast %34 : vector<1x128xf32> to vector<8x128xf32>
    %36 = arith.addf %33, %35 : vector<8x128xf32>
    %cst_17 = arith.constant 0.00999999977 : f32
    %37 = vector.broadcast %cst_17 : f32 to vector<8x128xf32>
    %38 = arith.mulf %37, %36 : vector<8x128xf32>
    %39 = arith.maximumf %36, %38 : vector<8x128xf32>
    %40 = vector.extract_strided_slice %39 {offsets = [0, 0], sizes = [8, 16], strides = [1, 1]} : vector<8x128xf32> to vector<8x16xf32>
    %41 = arith.truncf %40 : vector<8x16xf32> to vector<8x16xbf16>
    %c80 = arith.constant 80 : index
    %c0_18 = arith.constant 0 : index
    %42 = vector.load %arg2[%c80, %c0_18] : memref<96x128xbf16, #tpu.memory_space<vmem>>, vector<16x128xbf16>
    %cst_19 = arith.constant dense<0.000000e+00> : vector<8x128xf32>
    %43 = tpu.matmul %41, %42, %cst_19 {dimension_numbers = #tpu.dot_dimension_numbers<[1], [0], [0], [1], [0, 0, 1, 1], [], []>} : vector<8x16xbf16>, vector<16x128xbf16>, vector<8x128xf32> -> vector<8x128xf32>
    %c4 = arith.constant 4 : index
    %c0_20 = arith.constant 0 : index
    %44 = vector.load %arg3[%c4, %c0_20] : memref<8x128xf32, #tpu.memory_space<vmem>>, vector<1x128xf32>
    %45 = vector.broadcast %44 : vector<1x128xf32> to vector<8x128xf32>
    %46 = arith.addf %43, %45 : vector<8x128xf32>
    %47 = vector.extract_strided_slice %46 {offsets = [0, 0], sizes = [8, 2], strides = [1, 1]} : vector<8x128xf32> to vector<8x2xf32>
    %c0_21 = arith.constant 0 : index
    %c0_22 = arith.constant 0 : index
    %48 = vector.load %arg4[%c0_21, %c0_22] : memref<8x2xf32, #tpu.memory_space<vmem>>, vector<8x2xf32>
    tpu.vector_store %arg4[%c0_21, %c0_22], %47 {strides = array<i32>} : memref<8x2xf32, #tpu.memory_space<vmem>>, vector<8x2xf32>,
    return
  }
  func.func @transform_0(%arg0: i32) -> (i32, i32) {
    %c0_i32 = arith.constant 0 : i32
    %c0_i32_0 = arith.constant 0 : i32
    return %arg0, %c0_i32 : i32, i32
  }
  func.func @transform_1(%arg0: i32) -> (i32, i32) {
    %c0_i32 = arith.constant 0 : i32
    %c0_i32_0 = arith.constant 0 : i32
    %c0_i32_1 = arith.constant 0 : i32
    return %c0_i32, %c0_i32_0 : i32, i32
  }
  func.func @transform_2(%arg0: i32) -> (i32, i32) {
    %c0_i32 = arith.constant 0 : i32
    %c0_i32_0 = arith.constant 0 : i32
    %c0_i32_1 = arith.constant 0 : i32
    return %c0_i32, %c0_i32_0 : i32, i32
  }
  func.func @transform_3(%arg0: i32) -> (i32, i32) {
    %c0_i32 = arith.constant 0 : i32
    %c0_i32_0 = arith.constant 0 : i32
    return %arg0, %c0_i32 : i32, i32
  }
}

</mosaic_0001>

<llo_original>
// kernel: blackbox_forward.1
$region0: #{blackbox_forward.1}
  #allocation0 [shape = 'u32[]', space=smem, size = 0x4, offset = 0x4, fixed_abs, tag = 'smem constant byte address 0x4 - core index']
  #allocation1 [shape = 'u32[144,128]{1,0:T(1,128)}', space=vmem, size = 0x12000, scoped, tag = 'internal scratch']
  %s0 = inlined_call_operand.hbm [shape: f32[8,16], index: 0, kind: input, shape index: {}]
  %s1 = inlined_call_operand.hbm [shape: bf16[96,128], index: 1, kind: input, shape index: {}]
  %s2 = inlined_call_operand.hbm [shape: f32[8,128], index: 2, kind: input, shape index: {}]
  %s3 = inlined_call_operand.vmem [shape: f32[8,2], index: 3, kind: output, shape index: {}]
  %s4 = sld [smem:[#allocation0]]
  $region34: #{blackbox_forward.1} parent=0
    _
  %s6 = ssub.s32 1, %s4
  %s7 = scalar_select 0, %s6, %s4
  $region1: #{blackbox_forward.1} parent=0
    #allocation2 [shape = 'u8[4096]{0}', space=vmem, size = 0x1000, scoped, tag = 'input window, operand 0, single buffered']
    #allocation3 [shape = 's32[1]{0}', space=sflag, size = 0x4, scoped, tag = 'scoped memory for blackbox_forward.1']
    #allocation4 [shape = 'u8[24576]{0}', space=vmem, size = 0x6000, scoped, tag = 'input window, operand 1, single buffered']
    #allocation5 [shape = 's32[1]{0}', space=sflag, size = 0x4, scoped, tag = 'scoped memory for blackbox_forward.1']
    #allocation6 [shape = 'u8[4096]{0}', space=vmem, size = 0x1000, scoped, tag = 'input window, operand 2, single buffered']
    %8 = vsyncpa [#allocation3], 0
    %9 = vsyncpa [#allocation5], 0
    // Predicated region
    $region2: #{blackbox_forward.1} parent=1 // pred_check
      _
    $region3: #{blackbox_forward.1} parent=1 // pred_check_branch
      %11 = sbr.rel (0) target = $region5
    $region4: #{blackbox_forward.1} parent=1 // pred_region
      %s13 = ssub.s32 128, 128
      %14 = vsyncadd [#allocation3], %s13
      %s16 = sshll.u32 [#allocation2], 4
      %s17 = int_to_ptr.vmem [resolvable:$true] %s16
      %19 = dma.hbm_to_vmem [thread:$0]  %s0, 128, %s17, [#allocation3]
    $region5: #{blackbox_forward.1} parent=1 // pred_fallthru
      _
    // Predicated region
    $region6: #{blackbox_forward.1} parent=1 // pred_check
      _
    $region7: #{blackbox_forward.1} parent=1 // pred_check_branch
      %21 = sbr.rel (0) target = $region9
    $region8: #{blackbox_forward.1} parent=1 // pred_region
      %s23 = ssub.s32 768, 768
      %24 = vsyncadd [#allocation5], %s23
      %s25 = sshll.u32 [#allocation4], 4
      %s26 = int_to_ptr.vmem [resolvable:$true] %s25
      %31 = dma.hbm_to_vmem [thread:$0]  %s1, 768, %s26, [#allocation5], 64, 64, 4
    $region9: #{blackbox_forward.1} parent=1 // pred_fallthru
      _
    // Predicated region
    $region10: #{blackbox_forward.1} parent=1 // pred_check
      _
    $region11: #{blackbox_forward.1} parent=1 // pred_check_branch
      %33 = sbr.rel (0) target = $region13
    $region12: #{blackbox_forward.1} parent=1 // pred_region
      %s35 = ssub.s32 128, 128
      %36 = vsyncadd [#allocation5], %s35
      %s38 = sshll.u32 [#allocation6], 4
      %s39 = int_to_ptr.vmem [resolvable:$true] %s38
      %41 = dma.hbm_to_vmem [thread:$0]  %s2, 128, %s39, [#allocation5]
    $region13: #{blackbox_forward.1} parent=1 // pred_fallthru
      _
    // Predicated region
    $region14: #{blackbox_forward.1} parent=1 // pred_check
      _
    $region15: #{blackbox_forward.1} parent=1 // pred_check_branch
      %43 = sbr.rel (0) target = $region17
    $region16: #{blackbox_forward.1} parent=1 // pred_region
      %44 = dma.done [#allocation3], 128
    $region17: #{blackbox_forward.1} parent=1 // pred_fallthru
      _
    // Predicated region
    $region18: #{blackbox_forward.1} parent=1 // pred_check
      _
    $region19: #{blackbox_forward.1} parent=1 // pred_check_branch
      %46 = sbr.rel (0) target = $region21
    $region20: #{blackbox_forward.1} parent=1 // pred_region
      %47 = dma.done [#allocation5], 768
    $region21: #{blackbox_forward.1} parent=1 // pred_fallthru
      _
    // Predicated region
    $region22: #{blackbox_forward.1} parent=1 // pred_check
      _
    $region23: #{blackbox_forward.1} parent=1 // pred_check_branch
      %49 = sbr.rel (0) target = $region25
    $region24: #{blackbox_forward.1} parent=1 // pred_region
      %50 = dma.done [#allocation5], 128
    $region25: #{blackbox_forward.1} parent=1 // pred_fallthru
      _
    %v52 = vld [vmem:[#allocation2] sm:$0xff]
    %v53 = vpack.c.bf16 %v52, %v52
    %v54 = vld [vmem:[#allocation4] sm:$0xf]
    %v55 = vld [vmem:[#allocation4 + $0x4] sm:$0xf]
    %v56 = vld [vmem:[#allocation6] sm:$0x1]
    %v57 = vlaneseq
    %v58 = vshrl.u32 %v57, 7
    %v59 = vsub.s32 0, %v58
    %v60 = vrot.slane %v56, %v59
    %v63 = vunpack.c.l.b16 %v54
    %v64 = vunpack.c.l.b16 %v55
    %v65 = vpack.c.b16 %v64, %v63
    %vm67 = vcmask 130048
    %v69 = vsel %vm67, %v53, 0
    %71 = vmatprep.subr.bf16.mxu0 0
    %72 = vmatpush1.bf16.msra.mxu0 %v65
    %73 = vmatprep.subr.bf16.mxu0 0
    %74 = vmatpush1.bf16.msra.mxu0 0
    %75 = vmatprep.subr.bf16.mxu0 0
    %76 = vmatpush1.bf16.msra.mxu0 0
    %77 = vmatprep.subr.bf16.mxu0 0
    %78 = vmatpush1.bf16.msra.mxu0 0
    %79 = vmatprep.subr.bf16.mxu0 0
    %80 = vmatpush1.bf16.msra.mxu0 0
    %81 = vmatprep.subr.bf16.mxu0 0
    %82 = vmatpush1.bf16.msra.mxu0 0
    %83 = vmatprep.subr.bf16.mxu0 0
    %84 = vmatpush1.bf16.msra.mxu0 0
    %85 = vmatprep.subr.bf16.mxu0 0
    %86 = vmatpush1.bf16.msra.mxu0 0
    %87 = vmatprep.subr.bf16.mxu0 0
    %88 = vmatpush1.bf16.msra.mxu0 0
    %89 = vmatprep.subr.bf16.mxu0 0
    %90 = vmatpush1.bf16.msra.mxu0 0
    %91 = vmatprep.subr.bf16.mxu0 0
    %92 = vmatpush1.bf16.msra.mxu0 0
    %93 = vmatprep.subr.bf16.mxu0 0
    %94 = vmatpush1.bf16.msra.mxu0 0
    %95 = vmatprep.subr.bf16.mxu0 0
    %96 = vmatpush1.bf16.msra.mxu0 0
    %97 = vmatprep.subr.bf16.mxu0 0
    %98 = vmatpush1.bf16.msra.mxu0 0
    %99 = vmatprep.subr.bf16.mxu0 0
    %100 = vmatpush1.bf16.msra.mxu0 0
    %101 = vmatprep.subr.bf16.mxu0 0
    %102 = vmatpush1.bf16.msra.mxu0 0
    %103 = vmatprep.mubr.bf16.mxu0 0
    %104 = vmatmul.mubr.bf16.gmra.mrb[0].mxu0 %v69
    %v105 = vpop.f32.mrb[0].mxu0
    %v106 = vadd.f32 %v60, %v105
    %v107 = vpop.f32.mrb[0].mxu0
    %v108 = vpop.f32.mrb[0].mxu0
    %v109 = vpop.f32.mrb[0].mxu0
    %110 = vdwg.mxu0
    %v111 = vmul.f32 %v106, 0.01
    %v112 = vmax.f32 %v106, %v111
    %v113 = vpack.c.bf16 %v112, %v112
    %v114 = vld [vmem:[#allocation4 + $0x8] sm:$0xf]
    %v115 = vld [vmem:[#allocation4 + $0xc] sm:$0xf]
    %v116 = vld [vmem:[#allocation4 + $0x10] sm:$0xf]
    %v117 = vld [vmem:[#allocation4 + $0x14] sm:$0xf]
    %v118 = vld [vmem:[#allocation6 + $0x1] sm:$0x1]
    %v119 = vlaneseq
    %v120 = vshrl.u32 %v119, 7
    %v121 = vsub.s32 0, %v120
    %v122 = vrot.slane %v118, %v121
    %v127 = vunpack.c.l.b16 %v114
    %v128 = vunpack.c.l.b16 %v115
    %v129 = vunpack.c.l.b16 %v116
    %v130 = vunpack.c.l.b16 %v117
    %v131 = vpack.c.b16 %v128, %v127
    %v132 = vpack.c.b16 %v130, %v129
    %vm135 = vcmask 261120
    %v137 = vsel %vm135, %v113, 0
    %139 = vmatprep.subr.bf16.mxu0 0
    %140 = vmatpush1.bf16.msra.mxu0 %v131
    %141 = vmatprep.subr.bf16.mxu0 0
    %142 = vmatpush1.bf16.msra.mxu0 %v132
    %143 = vmatprep.subr.bf16.mxu0 0
    %144 = vmatpush1.bf16.msra.mxu0 0
    %145 = vmatprep.subr.bf16.mxu0 0
    %146 = vmatpush1.bf16.msra.mxu0 0
    %147 = vmatprep.subr.bf16.mxu0 0
    %148 = vmatpush1.bf16.msra.mxu0 0
    %149 = vmatprep.subr.bf16.mxu0 0
    %150 = vmatpush1.bf16.msra.mxu0 0
    %151 = vmatprep.subr.bf16.mxu0 0
    %152 = vmatpush1.bf16.msra.mxu0 0
    %153 = vmatprep.subr.bf16.mxu0 0
    %154 = vmatpush1.bf16.msra.mxu0 0
    %155 = vmatprep.subr.bf16.mxu0 0
    %156 = vmatpush1.bf16.msra.mxu0 0
    %157 = vmatprep.subr.bf16.mxu0 0
    %158 = vmatpush1.bf16.msra.mxu0 0
    %159 = vmatprep.subr.bf16.mxu0 0
    %160 = vmatpush1.bf16.msra.mxu0 0
    %161 = vmatprep.subr.bf16.mxu0 0
    %162 = vmatpush1.bf16.msra.mxu0 0
    %163 = vmatprep.subr.bf16.mxu0 0
    %164 = vmatpush1.bf16.msra.mxu0 0
    %165 = vmatprep.subr.bf16.mxu0 0
    %166 = vmatpush1.bf16.msra.mxu0 0
    %167 = vmatprep.subr.bf16.mxu0 0
    %168 = vmatpush1.bf16.msra.mxu0 0
    %169 = vmatprep.subr.bf16.mxu0 0
    %170 = vmatpush1.bf16.msra.mxu0 0
    %171 = vmatprep.mubr.bf16.mxu0 0
    %172 = vmatmul.mubr.bf16.gmra.mrb[0].mxu0 %v137
    %v173 = vpop.f32.mrb[0].mxu0
    %v174 = vadd.f32 %v122, %v173
    %v175 = vpop.f32.mrb[0].mxu0
    %v176 = vpop.f32.mrb[0].mxu0
    %v177 = vpop.f32.mrb[0].mxu0
    %178 = vdwg.mxu0
    %v179 = vmul.f32 %v174, 0.01
    %v180 = vmax.f32 %v174, %v179
    %v181 = vpack.c.bf16 %v180, %v180
    %v182 = vld [vmem:[#allocation4 + $0x18] sm:$0xf]
    %v183 = vld [vmem:[#allocation4 + $0x1c] sm:$0xf]
    %v184 = vld [vmem:[#allocation6 + $0x2] sm:$0x1]
    %v185 = vlaneseq
    %v186 = vshrl.u32 %v185, 7
    %v187 = vsub.s32 0, %v186
    %v188 = vrot.slane %v184, %v187
    %v191 = vunpack.c.l.b16 %v182
    %v192 = vunpack.c.l.b16 %v183
    %v193 = vpack.c.b16 %v192, %v191
    %v196 = vsel %vm67, %v181, 0
    %198 = vmatprep.subr.bf16.mxu0 0
    %199 = vmatpush1.bf16.msra.mxu0 %v193
    %200 = vmatprep.subr.bf16.mxu0 0
    %201 = vmatpush1.bf16.msra.mxu0 0
    %202 = vmatprep.subr.bf16.mxu0 0
    %203 = vmatpush1.bf16.msra.mxu0 0
    %204 = vmatprep.subr.bf16.mxu0 0
    %205 = vmatpush1.bf16.msra.mxu0 0
    %206 = vmatprep.subr.bf16.mxu0 0
    %207 = vmatpush1.bf16.msra.mxu0 0
    %208 = vmatprep.subr.bf16.mxu0 0
    %209 = vmatpush1.bf16.msra.mxu0 0
    %210 = vmatprep.subr.bf16.mxu0 0
    %211 = vmatpush1.bf16.msra.mxu0 0
    %212 = vmatprep.subr.bf16.mxu0 0
    %213 = vmatpush1.bf16.msra.mxu0 0
    %214 = vmatprep.subr.bf16.mxu0 0
    %215 = vmatpush1.bf16.msra.mxu0 0
    %216 = vmatprep.subr.bf16.mxu0 0
    %217 = vmatpush1.bf16.msra.mxu0 0
    %218 = vmatprep.subr.bf16.mxu0 0
    %219 = vmatpush1.bf16.msra.mxu0 0
    %220 = vmatprep.subr.bf16.mxu0 0
    %221 = vmatpush1.bf16.msra.mxu0 0
    %222 = vmatprep.subr.bf16.mxu0 0
    %223 = vmatpush1.bf16.msra.mxu0 0
    %224 = vmatprep.subr.bf16.mxu0 0
    %225 = vmatpush1.bf16.msra.mxu0 0
    %226 = vmatprep.subr.bf16.mxu0 0
    %227 = vmatpush1.bf16.msra.mxu0 0
    %228 = vmatprep.subr.bf16.mxu0 0
    %229 = vmatpush1.bf16.msra.mxu0 0
    %230 = vmatprep.mubr.bf16.mxu0 0
    %231 = vmatmul.mubr.bf16.gmra.mrb[0].mxu0 %v196
    %v232 = vpop.f32.mrb[0].mxu0
    %v233 = vadd.f32 %v188, %v232
    %v234 = vpop.f32.mrb[0].mxu0
    %v235 = vpop.f32.mrb[0].mxu0
    %v236 = vpop.f32.mrb[0].mxu0
    %237 = vdwg.mxu0
    %v238 = vmul.f32 %v233, 0.01
    %v239 = vmax.f32 %v233, %v238
    %v240 = vpack.c.bf16 %v239, %v239
    %v241 = vld [vmem:[#allocation4 + $0x20] sm:$0xf]
    %v242 = vld [vmem:[#allocation4 + $0x24] sm:$0xf]
    %v243 = vld [vmem:[#allocation6 + $0x3] sm:$0x1]
    %v244 = vlaneseq
    %v245 = vshrl.u32 %v244, 7
    %v246 = vsub.s32 0, %v245
    %v247 = vrot.slane %v243, %v246
    %v250 = vunpack.c.l.b16 %v241
    %v251 = vunpack.c.l.b16 %v242
    %v252 = vpack.c.b16 %v251, %v250
    %v255 = vsel %vm67, %v240, 0
    %257 = vmatprep.subr.bf16.mxu0 0
    %258 = vmatpush1.bf16.msra.mxu0 %v252
    %259 = vmatprep.subr.bf16.mxu0 0
    %260 = vmatpush1.bf16.msra.mxu0 0
    %261 = vmatprep.subr.bf16.mxu0 0
    %262 = vmatpush1.bf16.msra.mxu0 0
    %263 = vmatprep.subr.bf16.mxu0 0
    %264 = vmatpush1.bf16.msra.mxu0 0
    %265 = vmatprep.subr.bf16.mxu0 0
    %266 = vmatpush1.bf16.msra.mxu0 0
    %267 = vmatprep.subr.bf16.mxu0 0
    %268 = vmatpush1.bf16.msra.mxu0 0
    %269 = vmatprep.subr.bf16.mxu0 0
    %270 = vmatpush1.bf16.msra.mxu0 0
    %271 = vmatprep.subr.bf16.mxu0 0
    %272 = vmatpush1.bf16.msra.mxu0 0
    %273 = vmatprep.subr.bf16.mxu0 0
    %274 = vmatpush1.bf16.msra.mxu0 0
    %275 = vmatprep.subr.bf16.mxu0 0
    %276 = vmatpush1.bf16.msra.mxu0 0
    %277 = vmatprep.subr.bf16.mxu0 0
    %278 = vmatpush1.bf16.msra.mxu0 0
    %279 = vmatprep.subr.bf16.mxu0 0
    %280 = vmatpush1.bf16.msra.mxu0 0
    %281 = vmatprep.subr.bf16.mxu0 0
    %282 = vmatpush1.bf16.msra.mxu0 0
    %283 = vmatprep.subr.bf16.mxu0 0
    %284 = vmatpush1.bf16.msra.mxu0 0
    %285 = vmatprep.subr.bf16.mxu0 0
    %286 = vmatpush1.bf16.msra.mxu0 0
    %287 = vmatprep.subr.bf16.mxu0 0
    %288 = vmatpush1.bf16.msra.mxu0 0
    %289 = vmatprep.mubr.bf16.mxu0 0
    %290 = vmatmul.mubr.bf16.gmra.mrb[0].mxu0 %v255
    %v291 = vpop.f32.mrb[0].mxu0
    %v292 = vadd.f32 %v247, %v291
    %v293 = vpop.f32.mrb[0].mxu0
    %v294 = vpop.f32.mrb[0].mxu0
    %v295 = vpop.f32.mrb[0].mxu0
    %296 = vdwg.mxu0
    %v297 = vmul.f32 %v292, 0.01
    %v298 = vmax.f32 %v292, %v297
    %v299 = vpack.c.bf16 %v298, %v298
    %v300 = vld [vmem:[#allocation4 + $0x28] sm:$0xf]
    %v301 = vld [vmem:[#allocation4 + $0x2c] sm:$0xf]
    %v302 = vld [vmem:[#allocation6 + $0x4] sm:$0x1]
    %v303 = vlaneseq
    %v304 = vshrl.u32 %v303, 7
    %v305 = vsub.s32 0, %v304
    %v306 = vrot.slane %v302, %v305
    %v309 = vunpack.c.l.b16 %v300
    %v310 = vunpack.c.l.b16 %v301
    %v311 = vpack.c.b16 %v310, %v309
    %v314 = vsel %vm67, %v299, 0
    %316 = vmatprep.subr.bf16.mxu0 0
    %317 = vmatpush1.bf16.msra.mxu0 %v311
    %318 = vmatprep.subr.bf16.mxu0 0
    %319 = vmatpush1.bf16.msra.mxu0 0
    %320 = vmatprep.subr.bf16.mxu0 0
    %321 = vmatpush1.bf16.msra.mxu0 0
    %322 = vmatprep.subr.bf16.mxu0 0
    %323 = vmatpush1.bf16.msra.mxu0 0
    %324 = vmatprep.subr.bf16.mxu0 0
    %325 = vmatpush1.bf16.msra.mxu0 0
    %326 = vmatprep.subr.bf16.mxu0 0
    %327 = vmatpush1.bf16.msra.mxu0 0
    %328 = vmatprep.subr.bf16.mxu0 0
    %329 = vmatpush1.bf16.msra.mxu0 0
    %330 = vmatprep.subr.bf16.mxu0 0
    %331 = vmatpush1.bf16.msra.mxu0 0
    %332 = vmatprep.subr.bf16.mxu0 0
    %333 = vmatpush1.bf16.msra.mxu0 0
    %334 = vmatprep.subr.bf16.mxu0 0
    %335 = vmatpush1.bf16.msra.mxu0 0
    %336 = vmatprep.subr.bf16.mxu0 0
    %337 = vmatpush1.bf16.msra.mxu0 0
    %338 = vmatprep.subr.bf16.mxu0 0
    %339 = vmatpush1.bf16.msra.mxu0 0
    %340 = vmatprep.subr.bf16.mxu0 0
    %341 = vmatpush1.bf16.msra.mxu0 0
    %342 = vmatprep.subr.bf16.mxu0 0
    %343 = vmatpush1.bf16.msra.mxu0 0
    %344 = vmatprep.subr.bf16.mxu0 0
    %345 = vmatpush1.bf16.msra.mxu0 0
    %346 = vmatprep.subr.bf16.mxu0 0
    %347 = vmatpush1.bf16.msra.mxu0 0
    %348 = vmatprep.mubr.bf16.mxu0 0
    %349 = vmatmul.mubr.bf16.gmra.mrb[0].mxu0 %v314
    %v350 = vpop.f32.mrb[0].mxu0
    %v351 = vadd.f32 %v306, %v350
    %v352 = vpop.f32.mrb[0].mxu0
    %v353 = vpop.f32.mrb[0].mxu0
    %v354 = vpop.f32.mrb[0].mxu0
    %355 = vdwg.mxu0
    %vm356 = vcmask 15360
    %357 = vst.msk [vmem:[%s3] sm:$0xff] %vm356, %v351
    // Predicated region
    $region26: #{blackbox_forward.1} parent=1 // pred_check
      _
    $region27: #{blackbox_forward.1} parent=1 // pred_check_branch
      %359 = sbr.rel (0) target = $region29
    $region28: #{blackbox_forward.1} parent=1 // pred_region
      _
    $region29: #{blackbox_forward.1} parent=1 // pred_fallthru
      _
    // Predicated region
    $region30: #{blackbox_forward.1} parent=1 // pred_check
      _
    $region31: #{blackbox_forward.1} parent=1 // pred_check_branch
      %361 = sbr.rel (0) target = $region33
    $region32: #{blackbox_forward.1} parent=1 // pred_region
      _
    $region33: #{blackbox_forward.1} parent=1 // pred_fallthru
      _
    %362 = vsyncpa [#allocation3], 1
    %363 = vsyncpa [#allocation5], 1

</llo_original>
